<compile_context>
chip_gen: v5e
topology: v5e:2x2
jax: 0.10.0
libtpu: 0.0.40
codegen_flags: <defaults>
</compile_context>

<pallas_src>
import functools
import math

import jax
import jax.numpy as jnp
from jax.experimental import pallas as pl
from jax.experimental.pallas import tpu as pltpu


def _round_up(x, m):
    return ((x + m - 1) // m) * m


_UNROLL = 4  # static unroll factor for the DMA issue / wait loops


def _gather_kernel(ids_ref, w_hbm, out_hbm, buf, gsem, wsem, *,
                   token_tile, num_embeddings):
    """Double-buffered HBM row-gather: rows -> VMEM slot -> HBM output tile."""
    tb = token_tile
    i = pl.program_id(0)
    nt = pl.num_programs(0)
    slot = i % 2
    nxt = 1 - slot

    def issue_rows(tile_idx, dst_slot):
        # One (1, d_pad) row DMA per token; all copies of a tile share one
        # semaphore (gsem[dst_slot]) and are identical in size.
        base = tile_idx * tb

        @pl.loop(0, tb // _UNROLL)
        def _grp(g):
            t0 = g * _UNROLL
            for u in range(_UNROLL):        # static partial unroll
                t = t0 + u
                gid = ids_ref[base + t]
                invalid = (gid < 0) | (gid >= num_embeddings)
                # invalid ids (outside the global vocab => zero in every shard)
                # fetch the appended all-zero row instead of a predicated store.
                row = jnp.where(invalid, num_embeddings, gid)
                pltpu.make_async_copy(
                    w_hbm.at[pl.ds(row, 1), :],
                    buf.at[dst_slot, pl.ds(t, 1), :],
                    gsem.at[dst_slot],
                ).start()

    def writeback(tile_idx, src_slot):
        off = pl.multiple_of(tile_idx * tb, tb)
        return pltpu.make_async_copy(
            buf.at[src_slot],
            out_hbm.at[pl.ds(off, tb), :],
            wsem.at[src_slot],
        )

    # Prime the pipeline: the first tile was not prefetched by a previous step.
    @pl.when(i == 0)
    def _():
        issue_rows(0, 0)

    # Free the other landing slot: wait for tile i-1's output writeback.
    @pl.when(i >= 1)
    def _():
        writeback(i - 1, nxt).wait()

    # Prefetch the next tile's rows while the current tile drains / writes back.
    @pl.when(i + 1 < nt)
    def _():
        issue_rows(i + 1, nxt)

    # Wait for all of the current tile's row DMAs.  Pure waits: every copy on
    # gsem[slot] has the identical (1, d_pad) size, so the reconstructed
    # descriptor below matches each issued transfer by construction.
    @pl.loop(0, tb // _UNROLL)
    def _wgrp(g):
        t0 = g * _UNROLL
        for u in range(_UNROLL):
            pltpu.make_async_copy(
                w_hbm.at[pl.ds(0, 1), :],
                buf.at[slot, pl.ds(t0 + u, 1), :],
                gsem.at[slot],
            ).wait()

    # Send the gathered tile straight from the landing buffer to HBM output.
    writeback(i, slot).start()

    @pl.when(i == nt - 1)
    def _():
        writeback(i, slot).wait()


def vocab_parallel_embedding(ids, weight_shards, vocab_ranges, *, token_tile=256):
    """Forward pass of VocabParallelEmbedding, fused across model-parallel shards."""
    b, s = ids.shape
    d = weight_shards[0].shape[1]
    dtype = weight_shards[0].dtype
    num_embeddings = int(vocab_ranges[-1][1])

    # VocabUtility produces disjoint, contiguous, rank-ordered ranges; verify,
    # so stacking the shards reproduces the master weight layout and the fused
    # gather equals mask + local-gather + all-reduce of the original module.
    expect = 0
    for (start, end), w_shard in zip(vocab_ranges, weight_shards):
        assert start == expect and (end - start) == w_shard.shape[0], \
            "vocab_ranges must be contiguous and match shard sizes"
        expect = end

    w = jnp.concatenate(weight_shards, axis=0)              # (V, D) master layout
    assert w.shape[0] == num_embeddings

    # Lane-dense output: pad the hidden dim up to a multiple of 128, and append
    # one all-zero row (index == num_embeddings) for out-of-vocab tokens.
    d_pad = _round_up(d, 128)
    w = jnp.pad(w, ((0, 1), (0, d_pad - d)))                # (V + 1, d_pad)

    itemsize = jnp.dtype(dtype).itemsize
    # Sublane-packing multiple: 8 rows (f32), 16 (bf16), 32 (int8/fp8).
    pack = max(8, 8 * (4 // itemsize))

    # Flatten + pad the token axis to a whole number of token tiles.
    ids_flat = ids.reshape(-1).astype(jnp.int32)
    t = ids_flat.shape[0]
    tb = _round_up(min(token_tile, _round_up(t, pack)), pack)
    # Cap the 2-slot landing buffer (only VMEM user) at ~32 MiB: safe for the
    # scoped-VMEM defaults / physical VMEM of v5e, v6e and v7x.
    max_slab_bytes = 32 << 20
    max_tb = max(pack, (max_slab_bytes // (2 * d_pad * itemsize)) // pack * pack)
    tb = max(pack, min(tb, max_tb))
    t_pad = _round_up(t, tb)
    if t_pad != t:
        ids_flat = jnp.pad(ids_flat, (0, t_pad - t))         # padded rows sliced off
    nt = t_pad // tb

    # ids are scalar-prefetched into SMEM (pads to next_pow2(4 * t_pad) bytes).
    # TODO(synk): tile ids through an SMEM BlockSpec for very long sequences.
    assert t_pad <= (1 << 17), "token count too large for SMEM scalar prefetch"

    kernel = functools.partial(
        _gather_kernel,
        token_tile=tb,
        num_embeddings=num_embeddings,
    )

    scratch_bytes = 2 * tb * d_pad * itemsize
    vmem_limit = int(max(scratch_bytes + (4 << 20), 16 << 20))

    out = pl.pallas_call(
        kernel,
        out_shape=jax.ShapeDtypeStruct((t_pad, d_pad), dtype),
        grid_spec=pltpu.PrefetchScalarGridSpec(
            num_scalar_prefetch=1,                           # ids -> SMEM
            grid=(nt,),
            in_specs=[pl.BlockSpec(memory_space=pl.ANY)],    # weight stays in HBM
            out_specs=pl.BlockSpec(memory_space=pl.ANY),     # output written by DMA
            scratch_shapes=[
                pltpu.VMEM((2, tb, d_pad), dtype),           # double-buffered landing slab
                pltpu.SemaphoreType.DMA((2,)),               # gather sem per slot (shared by rows)
                pltpu.SemaphoreType.DMA((2,)),               # writeback sem per slot
            ],
        ),
        compiler_params=pltpu.CompilerParams(
            dimension_semantics=("arbitrary",),              # cross-step pipeline carries state
            vmem_limit_bytes=vmem_limit,
        ),
        cost_estimate=pl.CostEstimate(
            flops=0,
            transcendentals=0,
            bytes_accessed=2 * t_pad * d_pad * itemsize + t_pad * 4,
        ),
    )(ids_flat, w)

    return out[:t, :d].reshape(b, s, d)


if __name__ == "__main__":
    # Synthetic config (small): vocab=64, hidden=32, batch=2, seq=8, world_size=2
    num_embeddings = 64
    embedding_dim = 32
    world_size = 2
    batch, seq = 2, 8

    key = jax.random.PRNGKey(0)
    k_w, k_ids = jax.random.split(key)

    # xavier_normal_ on the master weight (deterministic)
    std = math.sqrt(2.0 / (num_embeddings + embedding_dim))
    master_weight = std * jax.random.normal(
        k_w, (num_embeddings, embedding_dim), dtype=jnp.float32
    )

    # Partition the vocab dim across "ranks" (VocabUtility.vocab_range_from_global_vocab_size)
    per_part = num_embeddings // world_size
    vocab_ranges = [(r * per_part, (r + 1) * per_part) for r in range(world_size)]
    weight_shards = [master_weight[s0:e0] for (s0, e0) in vocab_ranges]

    ids = jax.random.randint(k_ids, (batch, seq), 0, num_embeddings, dtype=jnp.int32)
    # Tokens outside the global vocab are masked in every shard -> zero rows
    # after the (fused) all-reduce.  Exercise that path.
    ids = ids.at[0, 0].set(num_embeddings + 3)
    ids = ids.at[1, 1].set(-2)

    # Small token_tile so the 16-token example spans 2 grid steps and exercises
    # the cross-step DMA pipeline.
    out = vocab_parallel_embedding(ids, weight_shards, vocab_ranges, token_tile=8)
    out = jax.block_until_ready(out)

    # Reference: gather from the master weight, zeros for out-of-vocab tokens.
    valid = (ids >= 0) & (ids < num_embeddings)
    ref = jnp.where(
        valid[..., None],
        jnp.take(master_weight, jnp.clip(ids, 0, num_embeddings - 1), axis=0),
        0.0,
    )

    assert out.shape == (batch, seq, embedding_dim)
    assert jnp.allclose(out, ref, atol=1e-5, rtol=1e-5), "mismatch vs reference"

    print("KERNEL_OK")
</pallas_src>

<mosaic_0001>
module attributes {stable_mosaic.version = 11 : i64} {
  func.func @_gather_kernel(%arg0: i32, %arg1: memref<16xi32, #tpu.memory_space<smem>>, %arg2: memref<65x128xf32, #tpu.memory_space<any>>, %arg3: memref<16x128xf32, #tpu.memory_space<any>>, %arg4: memref<2x8x128xf32, #tpu.memory_space<vmem>>, %arg5: memref<2x!tpu.dma_semaphore, #tpu.memory_space<semaphore_mem>>, %arg6: memref<2x!tpu.dma_semaphore, #tpu.memory_space<semaphore_mem>>) attributes {dimension_semantics = [#tpu.dimension_semantics<arbitrary>], iteration_bounds = array<i64: 2>, scalar_prefetch = 1 : i64, scratch_operands = 3 : i64, tpu.core_type = #tpu.core_type<tc>, window_params = [{}, {}]} {
    %c2_i32 = arith.constant 2 : i32
    %c0_i32 = arith.constant 0 : i32
    %0 = arith.cmpi eq, %c2_i32, %c0_i32 : i32
    %c1_i32 = arith.constant 1 : i32
    %1 = arith.select %0, %c1_i32, %c2_i32 : i32
    %2 = arith.remsi %arg0, %1 : i32
    %c0_i32_0 = arith.constant 0 : i32
    %3 = arith.cmpi ne, %2, %c0_i32_0 : i32
    %c0_i32_1 = arith.constant 0 : i32
    %4 = arith.cmpi slt, %2, %c0_i32_1 : i32
    %c0_i32_2 = arith.constant 0 : i32
    %5 = arith.cmpi slt, %1, %c0_i32_2 : i32
    %6 = arith.xori %4, %5 : i1
    %7 = arith.andi %6, %3 : i1
    %8 = arith.addi %2, %1 : i32
    %9 = arith.select %7, %8, %2 : i32
    %c1_i32_3 = arith.constant 1 : i32
    %10 = arith.subi %c1_i32_3, %9 : i32
    %c0_i32_4 = arith.constant 0 : i32
    %11 = arith.cmpi eq, %arg0, %c0_i32_4 : i32
    %12 = arith.extui %11 : i1 to i32
    %c0_i32_5 = arith.constant 0 : i32
    %13 = arith.cmpi ne, %12, %c0_i32_5 : i32
    scf.if %13 {
      %c0_i32_20 = arith.constant 0 : i32
      %c2_i32_21 = arith.constant 2 : i32
      %32 = arith.addi %c0_i32_20, %c2_i32_21 : i32
      %c1_i32_22 = arith.constant 1 : i32
      scf.for %arg7 = %c0_i32_20 to %32 step %c1_i32_22  : i32 {
        %c1_i32_24 = arith.constant 1 : i32
        %33 = arith.muli %arg7, %c1_i32_24 : i32
        %c0_i32_25 = arith.constant 0 : i32
        %34 = arith.addi %c0_i32_25, %33 : i32
        %c4_i32 = arith.constant 4 : i32
        %35 = arith.muli %34, %c4_i32 : i32
        %c0_i32_26 = arith.constant 0 : i32
        %36 = arith.addi %35, %c0_i32_26 : i32
        %c0_i32_27 = arith.constant 0 : i32
        %37 = arith.addi %c0_i32_27, %36 : i32
        %38 = arith.index_cast %37 : i32 to index
        %39 = memref.load %arg1[%38] : memref<16xi32, #tpu.memory_space<smem>>
        %c0_i32_28 = arith.constant 0 : i32
        %40 = arith.cmpi slt, %39, %c0_i32_28 : i32
        %c64_i32 = arith.constant 64 : i32
        %41 = arith.cmpi sge, %39, %c64_i32 : i32
        %42 = arith.ori %40, %41 : i1
        %c64_i32_29 = arith.constant 64 : i32
        %43 = arith.select %42, %c64_i32_29, %39 : i32
        %c0_i32_30 = arith.constant 0 : i32
        %c0_i32_31 = arith.constant 0 : i32
        %c0_i32_32 = arith.constant 0 : i32
        %44 = tpu.memref_slice %arg2[%43, %c0_i32_32] : memref<65x128xf32, #tpu.memory_space<any>> -> memref<1x128xf32, #tpu.memory_space<any>>
        %c0_i32_33 = arith.constant 0 : i32
        %45 = tpu.memref_slice %arg4[%c0_i32_30, %36, %c0_i32_33] : memref<2x8x128xf32, #tpu.memory_space<vmem>> -> memref<1x1x128xf32, #tpu.memory_space<vmem>>
        %46 = tpu.memref_squeeze %45 : memref<1x1x128xf32, #tpu.memory_space<vmem>> -> memref<1x128xf32, #tpu.memory_space<vmem>>
        %47 = tpu.memref_slice %arg5[%c0_i32_31] : memref<2x!tpu.dma_semaphore, #tpu.memory_space<semaphore_mem>> -> memref<1x!tpu.dma_semaphore, #tpu.memory_space<semaphore_mem>>
        %48 = tpu.memref_squeeze %47 : memref<1x!tpu.dma_semaphore, #tpu.memory_space<semaphore_mem>> -> memref<!tpu.dma_semaphore, #tpu.memory_space<semaphore_mem>>
        tpu.enqueue_dma source(%44 : memref<1x128xf32, #tpu.memory_space<any>>) target(%46 : memref<1x128xf32, #tpu.memory_space<vmem>>) target_semaphore(%48 : memref<!tpu.dma_semaphore, #tpu.memory_space<semaphore_mem>>)
        %c1_i32_34 = arith.constant 1 : i32
        %49 = arith.addi %35, %c1_i32_34 : i32
        %c0_i32_35 = arith.constant 0 : i32
        %50 = arith.addi %c0_i32_35, %49 : i32
        %51 = arith.index_cast %50 : i32 to index
        %52 = memref.load %arg1[%51] : memref<16xi32, #tpu.memory_space<smem>>
        %c0_i32_36 = arith.constant 0 : i32
        %53 = arith.cmpi slt, %52, %c0_i32_36 : i32
        %c64_i32_37 = arith.constant 64 : i32
        %54 = arith.cmpi sge, %52, %c64_i32_37 : i32
        %55 = arith.ori %53, %54 : i1
        %c64_i32_38 = arith.constant 64 : i32
        %56 = arith.select %55, %c64_i32_38, %52 : i32
        %c0_i32_39 = arith.constant 0 : i32
        %c0_i32_40 = arith.constant 0 : i32
        %c0_i32_41 = arith.constant 0 : i32
        %57 = tpu.memref_slice %arg2[%56, %c0_i32_41] : memref<65x128xf32, #tpu.memory_space<any>> -> memref<1x128xf32, #tpu.memory_space<any>>
        %c0_i32_42 = arith.constant 0 : i32
        %58 = tpu.memref_slice %arg4[%c0_i32_39, %49, %c0_i32_42] : memref<2x8x128xf32, #tpu.memory_space<vmem>> -> memref<1x1x128xf32, #tpu.memory_space<vmem>>
        %59 = tpu.memref_squeeze %58 : memref<1x1x128xf32, #tpu.memory_space<vmem>> -> memref<1x128xf32, #tpu.memory_space<vmem>>
        %60 = tpu.memref_slice %arg5[%c0_i32_40] : memref<2x!tpu.dma_semaphore, #tpu.memory_space<semaphore_mem>> -> memref<1x!tpu.dma_semaphore, #tpu.memory_space<semaphore_mem>>
        %61 = tpu.memref_squeeze %60 : memref<1x!tpu.dma_semaphore, #tpu.memory_space<semaphore_mem>> -> memref<!tpu.dma_semaphore, #tpu.memory_space<semaphore_mem>>
        tpu.enqueue_dma source(%57 : memref<1x128xf32, #tpu.memory_space<any>>) target(%59 : memref<1x128xf32, #tpu.memory_space<vmem>>) target_semaphore(%61 : memref<!tpu.dma_semaphore, #tpu.memory_space<semaphore_mem>>)
        %c2_i32_43 = arith.constant 2 : i32
        %62 = arith.addi %35, %c2_i32_43 : i32
        %c0_i32_44 = arith.constant 0 : i32
        %63 = arith.addi %c0_i32_44, %62 : i32
        %64 = arith.index_cast %63 : i32 to index
        %65 = memref.load %arg1[%64] : memref<16xi32, #tpu.memory_space<smem>>
        %c0_i32_45 = arith.constant 0 : i32
        %66 = arith.cmpi slt, %65, %c0_i32_45 : i32
        %c64_i32_46 = arith.constant 64 : i32
        %67 = arith.cmpi sge, %65, %c64_i32_46 : i32
        %68 = arith.ori %66, %67 : i1
        %c64_i32_47 = arith.constant 64 : i32
        %69 = arith.select %68, %c64_i32_47, %65 : i32
        %c0_i32_48 = arith.constant 0 : i32
        %c0_i32_49 = arith.constant 0 : i32
        %c0_i32_50 = arith.constant 0 : i32
        %70 = tpu.memref_slice %arg2[%69, %c0_i32_50] : memref<65x128xf32, #tpu.memory_space<any>> -> memref<1x128xf32, #tpu.memory_space<any>>
        %c0_i32_51 = arith.constant 0 : i32
        %71 = tpu.memref_slice %arg4[%c0_i32_48, %62, %c0_i32_51] : memref<2x8x128xf32, #tpu.memory_space<vmem>> -> memref<1x1x128xf32, #tpu.memory_space<vmem>>
        %72 = tpu.memref_squeeze %71 : memref<1x1x128xf32, #tpu.memory_space<vmem>> -> memref<1x128xf32, #tpu.memory_space<vmem>>
        %73 = tpu.memref_slice %arg5[%c0_i32_49] : memref<2x!tpu.dma_semaphore, #tpu.memory_space<semaphore_mem>> -> memref<1x!tpu.dma_semaphore, #tpu.memory_space<semaphore_mem>>
        %74 = tpu.memref_squeeze %73 : memref<1x!tpu.dma_semaphore, #tpu.memory_space<semaphore_mem>> -> memref<!tpu.dma_semaphore, #tpu.memory_space<semaphore_mem>>
        tpu.enqueue_dma source(%70 : memref<1x128xf32, #tpu.memory_space<any>>) target(%72 : memref<1x128xf32, #tpu.memory_space<vmem>>) target_semaphore(%74 : memref<!tpu.dma_semaphore, #tpu.memory_space<semaphore_mem>>)
        %c3_i32 = arith.constant 3 : i32
        %75 = arith.addi %35, %c3_i32 : i32
        %c0_i32_52 = arith.constant 0 : i32
        %76 = arith.addi %c0_i32_52, %75 : i32
        %77 = arith.index_cast %76 : i32 to index
        %78 = memref.load %arg1[%77] : memref<16xi32, #tpu.memory_space<smem>>
        %c0_i32_53 = arith.constant 0 : i32
        %79 = arith.cmpi slt, %78, %c0_i32_53 : i32
        %c64_i32_54 = arith.constant 64 : i32
        %80 = arith.cmpi sge, %78, %c64_i32_54 : i32
        %81 = arith.ori %79, %80 : i1
        %c64_i32_55 = arith.constant 64 : i32
        %82 = arith.select %81, %c64_i32_55, %78 : i32
        %c0_i32_56 = arith.constant 0 : i32
        %c0_i32_57 = arith.constant 0 : i32
        %c0_i32_58 = arith.constant 0 : i32
        %83 = tpu.memref_slice %arg2[%82, %c0_i32_58] : memref<65x128xf32, #tpu.memory_space<any>> -> memref<1x128xf32, #tpu.memory_space<any>>
        %c0_i32_59 = arith.constant 0 : i32
        %84 = tpu.memref_slice %arg4[%c0_i32_56, %75, %c0_i32_59] : memref<2x8x128xf32, #tpu.memory_space<vmem>> -> memref<1x1x128xf32, #tpu.memory_space<vmem>>
        %85 = tpu.memref_squeeze %84 : memref<1x1x128xf32, #tpu.memory_space<vmem>> -> memref<1x128xf32, #tpu.memory_space<vmem>>
        %86 = tpu.memref_slice %arg5[%c0_i32_57] : memref<2x!tpu.dma_semaphore, #tpu.memory_space<semaphore_mem>> -> memref<1x!tpu.dma_semaphore, #tpu.memory_space<semaphore_mem>>
        %87 = tpu.memref_squeeze %86 : memref<1x!tpu.dma_semaphore, #tpu.memory_space<semaphore_mem>> -> memref<!tpu.dma_semaphore, #tpu.memory_space<semaphore_mem>>
        tpu.enqueue_dma source(%83 : memref<1x128xf32, #tpu.memory_space<any>>) target(%85 : memref<1x128xf32, #tpu.memory_space<vmem>>) target_semaphore(%87 : memref<!tpu.dma_semaphore, #tpu.memory_space<semaphore_mem>>)
      }
      %c2_i32_23 = arith.constant 2 : i32
    } else {
    }
    %c1_i32_6 = arith.constant 1 : i32
    %14 = arith.cmpi sge, %arg0, %c1_i32_6 : i32
    %15 = arith.extui %14 : i1 to i32
    %c0_i32_7 = arith.constant 0 : i32
    %16 = arith.cmpi ne, %15, %c0_i32_7 : i32
    scf.if %16 {
      %c1_i32_20 = arith.constant 1 : i32
      %32 = arith.subi %arg0, %c1_i32_20 : i32
      %c8_i32_21 = arith.constant 8 : i32
      %33 = arith.muli %32, %c8_i32_21 : i32
      %34 = tpu.assume_multiple %33, 8 : i32
      %c0_i32_22 = arith.constant 0 : i32
      %c0_i32_23 = arith.constant 0 : i32
      %35 = tpu.memref_slice %arg4[%10, %c0_i32_22, %c0_i32_23] : memref<2x8x128xf32, #tpu.memory_space<vmem>> -> memref<1x8x128xf32, #tpu.memory_space<vmem>>
      %36 = tpu.memref_squeeze %35 : memref<1x8x128xf32, #tpu.memory_space<vmem>> -> memref<8x128xf32, #tpu.memory_space<vmem>>
      %c0_i32_24 = arith.constant 0 : i32
      %37 = tpu.memref_slice %arg3[%34, %c0_i32_24] : memref<16x128xf32, #tpu.memory_space<any>> -> memref<8x128xf32, #tpu.memory_space<any>>
      %38 = tpu.memref_slice %arg6[%10] : memref<2x!tpu.dma_semaphore, #tpu.memory_space<semaphore_mem>> -> memref<1x!tpu.dma_semaphore, #tpu.memory_space<semaphore_mem>>
      %39 = tpu.memref_squeeze %38 : memref<1x!tpu.dma_semaphore, #tpu.memory_space<semaphore_mem>> -> memref<!tpu.dma_semaphore, #tpu.memory_space<semaphore_mem>>
      tpu.wait_dma2 semaphore(%39 : memref<!tpu.dma_semaphore, #tpu.memory_space<semaphore_mem>>) src(%36 : memref<8x128xf32, #tpu.memory_space<vmem>>) dst(%37 : memref<8x128xf32, #tpu.memory_space<any>>)
    } else {
    }
    %c1_i32_8 = arith.constant 1 : i32
    %17 = arith.addi %arg0, %c1_i32_8 : i32
    %c2_i32_9 = arith.constant 2 : i32
    %18 = arith.cmpi slt, %17, %c2_i32_9 : i32
    %19 = arith.extui %18 : i1 to i32
    %c0_i32_10 = arith.constant 0 : i32
    %20 = arith.cmpi ne, %19, %c0_i32_10 : i32
    scf.if %20 {
      %c1_i32_20 = arith.constant 1 : i32
      %32 = arith.addi %arg0, %c1_i32_20 : i32
      %c8_i32_21 = arith.constant 8 : i32
      %33 = arith.muli %32, %c8_i32_21 : i32
      %c0_i32_22 = arith.constant 0 : i32
      %c2_i32_23 = arith.constant 2 : i32
      %34 = arith.addi %c0_i32_22, %c2_i32_23 : i32
      %c1_i32_24 = arith.constant 1 : i32
      scf.for %arg7 = %c0_i32_22 to %34 step %c1_i32_24  : i32 {
        %c1_i32_26 = arith.constant 1 : i32
        %35 = arith.muli %arg7, %c1_i32_26 : i32
        %c0_i32_27 = arith.constant 0 : i32
        %36 = arith.addi %c0_i32_27, %35 : i32
        %c4_i32 = arith.constant 4 : i32
        %37 = arith.muli %36, %c4_i32 : i32
        %c0_i32_28 = arith.constant 0 : i32
        %38 = arith.addi %37, %c0_i32_28 : i32
        %39 = arith.addi %33, %38 : i32
        %40 = arith.index_cast %39 : i32 to index
        %41 = memref.load %arg1[%40] : memref<16xi32, #tpu.memory_space<smem>>
        %c0_i32_29 = arith.constant 0 : i32
        %42 = arith.cmpi slt, %41, %c0_i32_29 : i32
        %c64_i32 = arith.constant 64 : i32
        %43 = arith.cmpi sge, %41, %c64_i32 : i32
        %44 = arith.ori %42, %43 : i1
        %c64_i32_30 = arith.constant 64 : i32
        %45 = arith.select %44, %c64_i32_30, %41 : i32
        %c0_i32_31 = arith.constant 0 : i32
        %46 = tpu.memref_slice %arg2[%45, %c0_i32_31] : memref<65x128xf32, #tpu.memory_space<any>> -> memref<1x128xf32, #tpu.memory_space<any>>
        %c0_i32_32 = arith.constant 0 : i32
        %47 = tpu.memref_slice %arg4[%10, %38, %c0_i32_32] : memref<2x8x128xf32, #tpu.memory_space<vmem>> -> memref<1x1x128xf32, #tpu.memory_space<vmem>>
        %48 = tpu.memref_squeeze %47 : memref<1x1x128xf32, #tpu.memory_space<vmem>> -> memref<1x128xf32, #tpu.memory_space<vmem>>
        %49 = tpu.memref_slice %arg5[%10] : memref<2x!tpu.dma_semaphore, #tpu.memory_space<semaphore_mem>> -> memref<1x!tpu.dma_semaphore, #tpu.memory_space<semaphore_mem>>
        %50 = tpu.memref_squeeze %49 : memref<1x!tpu.dma_semaphore, #tpu.memory_space<semaphore_mem>> -> memref<!tpu.dma_semaphore, #tpu.memory_space<semaphore_mem>>
        tpu.enqueue_dma source(%46 : memref<1x128xf32, #tpu.memory_space<any>>) target(%48 : memref<1x128xf32, #tpu.memory_space<vmem>>) target_semaphore(%50 : memref<!tpu.dma_semaphore, #tpu.memory_space<semaphore_mem>>)
        %c1_i32_33 = arith.constant 1 : i32
        %51 = arith.addi %37, %c1_i32_33 : i32
        %52 = arith.addi %33, %51 : i32
        %53 = arith.index_cast %52 : i32 to index
        %54 = memref.load %arg1[%53] : memref<16xi32, #tpu.memory_space<smem>>
        %c0_i32_34 = arith.constant 0 : i32
        %55 = arith.cmpi slt, %54, %c0_i32_34 : i32
        %c64_i32_35 = arith.constant 64 : i32
        %56 = arith.cmpi sge, %54, %c64_i32_35 : i32
        %57 = arith.ori %55, %56 : i1
        %c64_i32_36 = arith.constant 64 : i32
        %58 = arith.select %57, %c64_i32_36, %54 : i32
        %c0_i32_37 = arith.constant 0 : i32
        %59 = tpu.memref_slice %arg2[%58, %c0_i32_37] : memref<65x128xf32, #tpu.memory_space<any>> -> memref<1x128xf32, #tpu.memory_space<any>>
        %c0_i32_38 = arith.constant 0 : i32
        %60 = tpu.memref_slice %arg4[%10, %51, %c0_i32_38] : memref<2x8x128xf32, #tpu.memory_space<vmem>> -> memref<1x1x128xf32, #tpu.memory_space<vmem>>
        %61 = tpu.memref_squeeze %60 : memref<1x1x128xf32, #tpu.memory_space<vmem>> -> memref<1x128xf32, #tpu.memory_space<vmem>>
        %62 = tpu.memref_slice %arg5[%10] : memref<2x!tpu.dma_semaphore, #tpu.memory_space<semaphore_mem>> -> memref<1x!tpu.dma_semaphore, #tpu.memory_space<semaphore_mem>>
        %63 = tpu.memref_squeeze %62 : memref<1x!tpu.dma_semaphore, #tpu.memory_space<semaphore_mem>> -> memref<!tpu.dma_semaphore, #tpu.memory_space<semaphore_mem>>
        tpu.enqueue_dma source(%59 : memref<1x128xf32, #tpu.memory_space<any>>) target(%61 : memref<1x128xf32, #tpu.memory_space<vmem>>) target_semaphore(%63 : memref<!tpu.dma_semaphore, #tpu.memory_space<semaphore_mem>>)
        %c2_i32_39 = arith.constant 2 : i32
        %64 = arith.addi %37, %c2_i32_39 : i32
        %65 = arith.addi %33, %64 : i32
        %66 = arith.index_cast %65 : i32 to index
        %67 = memref.load %arg1[%66] : memref<16xi32, #tpu.memory_space<smem>>
        %c0_i32_40 = arith.constant 0 : i32
        %68 = arith.cmpi slt, %67, %c0_i32_40 : i32
        %c64_i32_41 = arith.constant 64 : i32
        %69 = arith.cmpi sge, %67, %c64_i32_41 : i32
        %70 = arith.ori %68, %69 : i1
        %c64_i32_42 = arith.constant 64 : i32
        %71 = arith.select %70, %c64_i32_42, %67 : i32
        %c0_i32_43 = arith.constant 0 : i32
        %72 = tpu.memref_slice %arg2[%71, %c0_i32_43] : memref<65x128xf32, #tpu.memory_space<any>> -> memref<1x128xf32, #tpu.memory_space<any>>
        %c0_i32_44 = arith.constant 0 : i32
        %73 = tpu.memref_slice %arg4[%10, %64, %c0_i32_44] : memref<2x8x128xf32, #tpu.memory_space<vmem>> -> memref<1x1x128xf32, #tpu.memory_space<vmem>>
        %74 = tpu.memref_squeeze %73 : memref<1x1x128xf32, #tpu.memory_space<vmem>> -> memref<1x128xf32, #tpu.memory_space<vmem>>
        %75 = tpu.memref_slice %arg5[%10] : memref<2x!tpu.dma_semaphore, #tpu.memory_space<semaphore_mem>> -> memref<1x!tpu.dma_semaphore, #tpu.memory_space<semaphore_mem>>
        %76 = tpu.memref_squeeze %75 : memref<1x!tpu.dma_semaphore, #tpu.memory_space<semaphore_mem>> -> memref<!tpu.dma_semaphore, #tpu.memory_space<semaphore_mem>>
        tpu.enqueue_dma source(%72 : memref<1x128xf32, #tpu.memory_space<any>>) target(%74 : memref<1x128xf32, #tpu.memory_space<vmem>>) target_semaphore(%76 : memref<!tpu.dma_semaphore, #tpu.memory_space<semaphore_mem>>)
        %c3_i32 = arith.constant 3 : i32
        %77 = arith.addi %37, %c3_i32 : i32
        %78 = arith.addi %33, %77 : i32
        %79 = arith.index_cast %78 : i32 to index
        %80 = memref.load %arg1[%79] : memref<16xi32, #tpu.memory_space<smem>>
        %c0_i32_45 = arith.constant 0 : i32
        %81 = arith.cmpi slt, %80, %c0_i32_45 : i32
        %c64_i32_46 = arith.constant 64 : i32
        %82 = arith.cmpi sge, %80, %c64_i32_46 : i32
        %83 = arith.ori %81, %82 : i1
        %c64_i32_47 = arith.constant 64 : i32
        %84 = arith.select %83, %c64_i32_47, %80 : i32
        %c0_i32_48 = arith.constant 0 : i32
        %85 = tpu.memref_slice %arg2[%84, %c0_i32_48] : memref<65x128xf32, #tpu.memory_space<any>> -> memref<1x128xf32, #tpu.memory_space<any>>
        %c0_i32_49 = arith.constant 0 : i32
        %86 = tpu.memref_slice %arg4[%10, %77, %c0_i32_49] : memref<2x8x128xf32, #tpu.memory_space<vmem>> -> memref<1x1x128xf32, #tpu.memory_space<vmem>>
        %87 = tpu.memref_squeeze %86 : memref<1x1x128xf32, #tpu.memory_space<vmem>> -> memref<1x128xf32, #tpu.memory_space<vmem>>
        %88 = tpu.memref_slice %arg5[%10] : memref<2x!tpu.dma_semaphore, #tpu.memory_space<semaphore_mem>> -> memref<1x!tpu.dma_semaphore, #tpu.memory_space<semaphore_mem>>
        %89 = tpu.memref_squeeze %88 : memref<1x!tpu.dma_semaphore, #tpu.memory_space<semaphore_mem>> -> memref<!tpu.dma_semaphore, #tpu.memory_space<semaphore_mem>>
        tpu.enqueue_dma source(%85 : memref<1x128xf32, #tpu.memory_space<any>>) target(%87 : memref<1x128xf32, #tpu.memory_space<vmem>>) target_semaphore(%89 : memref<!tpu.dma_semaphore, #tpu.memory_space<semaphore_mem>>)
      }
      %c2_i32_25 = arith.constant 2 : i32
    } else {
    }
    %c0_i32_11 = arith.constant 0 : i32
    %c2_i32_12 = arith.constant 2 : i32
    %21 = arith.addi %c0_i32_11, %c2_i32_12 : i32
    %c1_i32_13 = arith.constant 1 : i32
    scf.for %arg7 = %c0_i32_11 to %21 step %c1_i32_13  : i32 {
      %c1_i32_20 = arith.constant 1 : i32
      %32 = arith.muli %arg7, %c1_i32_20 : i32
      %c0_i32_21 = arith.constant 0 : i32
      %33 = arith.addi %c0_i32_21, %32 : i32
      %c4_i32 = arith.constant 4 : i32
      %34 = arith.muli %33, %c4_i32 : i32
      %c0_i32_22 = arith.constant 0 : i32
      %35 = arith.addi %34, %c0_i32_22 : i32
      %c0_i32_23 = arith.constant 0 : i32
      %c0_i32_24 = arith.constant 0 : i32
      %36 = tpu.memref_slice %arg2[%c0_i32_23, %c0_i32_24] : memref<65x128xf32, #tpu.memory_space<any>> -> memref<1x128xf32, #tpu.memory_space<any>>
      %c0_i32_25 = arith.constant 0 : i32
      %37 = tpu.memref_slice %arg4[%9, %35, %c0_i32_25] : memref<2x8x128xf32, #tpu.memory_space<vmem>> -> memref<1x1x128xf32, #tpu.memory_space<vmem>>
      %38 = tpu.memref_squeeze %37 : memref<1x1x128xf32, #tpu.memory_space<vmem>> -> memref<1x128xf32, #tpu.memory_space<vmem>>
      %39 = tpu.memref_slice %arg5[%9] : memref<2x!tpu.dma_semaphore, #tpu.memory_space<semaphore_mem>> -> memref<1x!tpu.dma_semaphore, #tpu.memory_space<semaphore_mem>>
      %40 = tpu.memref_squeeze %39 : memref<1x!tpu.dma_semaphore, #tpu.memory_space<semaphore_mem>> -> memref<!tpu.dma_semaphore, #tpu.memory_space<semaphore_mem>>
      tpu.wait_dma2 semaphore(%40 : memref<!tpu.dma_semaphore, #tpu.memory_space<semaphore_mem>>) src(%36 : memref<1x128xf32, #tpu.memory_space<any>>) dst(%38 : memref<1x128xf32, #tpu.memory_space<vmem>>)
      %c1_i32_26 = arith.constant 1 : i32
      %41 = arith.addi %34, %c1_i32_26 : i32
      %c0_i32_27 = arith.constant 0 : i32
      %c0_i32_28 = arith.constant 0 : i32
      %42 = tpu.memref_slice %arg2[%c0_i32_27, %c0_i32_28] : memref<65x128xf32, #tpu.memory_space<any>> -> memref<1x128xf32, #tpu.memory_space<any>>
      %c0_i32_29 = arith.constant 0 : i32
      %43 = tpu.memref_slice %arg4[%9, %41, %c0_i32_29] : memref<2x8x128xf32, #tpu.memory_space<vmem>> -> memref<1x1x128xf32, #tpu.memory_space<vmem>>
      %44 = tpu.memref_squeeze %43 : memref<1x1x128xf32, #tpu.memory_space<vmem>> -> memref<1x128xf32, #tpu.memory_space<vmem>>
      %45 = tpu.memref_slice %arg5[%9] : memref<2x!tpu.dma_semaphore, #tpu.memory_space<semaphore_mem>> -> memref<1x!tpu.dma_semaphore, #tpu.memory_space<semaphore_mem>>
      %46 = tpu.memref_squeeze %45 : memref<1x!tpu.dma_semaphore, #tpu.memory_space<semaphore_mem>> -> memref<!tpu.dma_semaphore, #tpu.memory_space<semaphore_mem>>
      tpu.wait_dma2 semaphore(%46 : memref<!tpu.dma_semaphore, #tpu.memory_space<semaphore_mem>>) src(%42 : memref<1x128xf32, #tpu.memory_space<any>>) dst(%44 : memref<1x128xf32, #tpu.memory_space<vmem>>)
      %c2_i32_30 = arith.constant 2 : i32
      %47 = arith.addi %34, %c2_i32_30 : i32
      %c0_i32_31 = arith.constant 0 : i32
      %c0_i32_32 = arith.constant 0 : i32
      %48 = tpu.memref_slice %arg2[%c0_i32_31, %c0_i32_32] : memref<65x128xf32, #tpu.memory_space<any>> -> memref<1x128xf32, #tpu.memory_space<any>>
      %c0_i32_33 = arith.constant 0 : i32
      %49 = tpu.memref_slice %arg4[%9, %47, %c0_i32_33] : memref<2x8x128xf32, #tpu.memory_space<vmem>> -> memref<1x1x128xf32, #tpu.memory_space<vmem>>
      %50 = tpu.memref_squeeze %49 : memref<1x1x128xf32, #tpu.memory_space<vmem>> -> memref<1x128xf32, #tpu.memory_space<vmem>>
      %51 = tpu.memref_slice %arg5[%9] : memref<2x!tpu.dma_semaphore, #tpu.memory_space<semaphore_mem>> -> memref<1x!tpu.dma_semaphore, #tpu.memory_space<semaphore_mem>>
      %52 = tpu.memref_squeeze %51 : memref<1x!tpu.dma_semaphore, #tpu.memory_space<semaphore_mem>> -> memref<!tpu.dma_semaphore, #tpu.memory_space<semaphore_mem>>
      tpu.wait_dma2 semaphore(%52 : memref<!tpu.dma_semaphore, #tpu.memory_space<semaphore_mem>>) src(%48 : memref<1x128xf32, #tpu.memory_space<any>>) dst(%50 : memref<1x128xf32, #tpu.memory_space<vmem>>)
      %c3_i32 = arith.constant 3 : i32
      %53 = arith.addi %34, %c3_i32 : i32
      %c0_i32_34 = arith.constant 0 : i32
      %c0_i32_35 = arith.constant 0 : i32
      %54 = tpu.memref_slice %arg2[%c0_i32_34, %c0_i32_35] : memref<65x128xf32, #tpu.memory_space<any>> -> memref<1x128xf32, #tpu.memory_space<any>>
      %c0_i32_36 = arith.constant 0 : i32
      %55 = tpu.memref_slice %arg4[%9, %53, %c0_i32_36] : memref<2x8x128xf32, #tpu.memory_space<vmem>> -> memref<1x1x128xf32, #tpu.memory_space<vmem>>
      %56 = tpu.memref_squeeze %55 : memref<1x1x128xf32, #tpu.memory_space<vmem>> -> memref<1x128xf32, #tpu.memory_space<vmem>>
      %57 = tpu.memref_slice %arg5[%9] : memref<2x!tpu.dma_semaphore, #tpu.memory_space<semaphore_mem>> -> memref<1x!tpu.dma_semaphore, #tpu.memory_space<semaphore_mem>>
      %58 = tpu.memref_squeeze %57 : memref<1x!tpu.dma_semaphore, #tpu.memory_space<semaphore_mem>> -> memref<!tpu.dma_semaphore, #tpu.memory_space<semaphore_mem>>
      tpu.wait_dma2 semaphore(%58 : memref<!tpu.dma_semaphore, #tpu.memory_space<semaphore_mem>>) src(%54 : memref<1x128xf32, #tpu.memory_space<any>>) dst(%56 : memref<1x128xf32, #tpu.memory_space<vmem>>)
    }
    %c2_i32_14 = arith.constant 2 : i32
    %c8_i32 = arith.constant 8 : i32
    %22 = arith.muli %arg0, %c8_i32 : i32
    %23 = tpu.assume_multiple %22, 8 : i32
    %c0_i32_15 = arith.constant 0 : i32
    %c0_i32_16 = arith.constant 0 : i32
    %24 = tpu.memref_slice %arg4[%9, %c0_i32_15, %c0_i32_16] : memref<2x8x128xf32, #tpu.memory_space<vmem>> -> memref<1x8x128xf32, #tpu.memory_space<vmem>>
    %25 = tpu.memref_squeeze %24 : memref<1x8x128xf32, #tpu.memory_space<vmem>> -> memref<8x128xf32, #tpu.memory_space<vmem>>
    %c0_i32_17 = arith.constant 0 : i32
    %26 = tpu.memref_slice %arg3[%23, %c0_i32_17] : memref<16x128xf32, #tpu.memory_space<any>> -> memref<8x128xf32, #tpu.memory_space<any>>
    %27 = tpu.memref_slice %arg6[%9] : memref<2x!tpu.dma_semaphore, #tpu.memory_space<semaphore_mem>> -> memref<1x!tpu.dma_semaphore, #tpu.memory_space<semaphore_mem>>
    %28 = tpu.memref_squeeze %27 : memref<1x!tpu.dma_semaphore, #tpu.memory_space<semaphore_mem>> -> memref<!tpu.dma_semaphore, #tpu.memory_space<semaphore_mem>>
    tpu.enqueue_dma source(%25 : memref<8x128xf32, #tpu.memory_space<vmem>>) target(%26 : memref<8x128xf32, #tpu.memory_space<any>>) target_semaphore(%28 : memref<!tpu.dma_semaphore, #tpu.memory_space<semaphore_mem>>)
    %c1_i32_18 = arith.constant 1 : i32
    %29 = arith.cmpi eq, %arg0, %c1_i32_18 : i32
    %30 = arith.extui %29 : i1 to i32
    %c0_i32_19 = arith.constant 0 : i32
    %31 = arith.cmpi ne, %30, %c0_i32_19 : i32
    scf.if %31 {
      %c8_i32_20 = arith.constant 8 : i32
      %32 = arith.muli %arg0, %c8_i32_20 : i32
      %33 = tpu.assume_multiple %32, 8 : i32
      %c0_i32_21 = arith.constant 0 : i32
      %c0_i32_22 = arith.constant 0 : i32
      %34 = tpu.memref_slice %arg4[%9, %c0_i32_21, %c0_i32_22] : memref<2x8x128xf32, #tpu.memory_space<vmem>> -> memref<1x8x128xf32, #tpu.memory_space<vmem>>
      %35 = tpu.memref_squeeze %34 : memref<1x8x128xf32, #tpu.memory_space<vmem>> -> memref<8x128xf32, #tpu.memory_space<vmem>>
      %c0_i32_23 = arith.constant 0 : i32
      %36 = tpu.memref_slice %arg3[%33, %c0_i32_23] : memref<16x128xf32, #tpu.memory_space<any>> -> memref<8x128xf32, #tpu.memory_space<any>>
      %37 = tpu.memref_slice %arg6[%9] : memref<2x!tpu.dma_semaphore, #tpu.memory_space<semaphore_mem>> -> memref<1x!tpu.dma_semaphore, #tpu.memory_space<semaphore_mem>>
      %38 = tpu.memref_squeeze %37 : memref<1x!tpu.dma_semaphore, #tpu.memory_space<semaphore_mem>> -> memref<!tpu.dma_semaphore, #tpu.memory_space<semaphore_mem>>
      tpu.wait_dma2 semaphore(%38 : memref<!tpu.dma_semaphore, #tpu.memory_space<semaphore_mem>>) src(%35 : memref<8x128xf32, #tpu.memory_space<vmem>>) dst(%36 : memref<8x128xf32, #tpu.memory_space<any>>)
    } else {
    }
    return
  }
}

</mosaic_0001>

<llo_original>
// kernel: tpu_custom_call.1
$region0: #{tpu_custom_call.1}
  #allocation0 [shape = 'u32[]', space=smem, size = 0x4, offset = 0x4, fixed_abs, tag = 'smem constant byte address 0x4 - core index']
  #allocation1 [shape = 'u32[72,128]{1,0:T(1,128)}', space=vmem, size = 0x9000, scoped, tag = 'internal scratch']
  #allocation2 [shape = 'f32[2,8,128]{2,1,0:T(8,128)}', space=vmem, size = 0x2000, scoped, tag = 'scratch operand']
  #allocation3 [shape = 's32[2]{0}', space=sflag, size = 0x8, scoped, tag = 'scratch operand']
  #allocation4 [shape = 's32[2]{0}', space=sflag, size = 0x8, scoped, tag = 'scratch operand']
  #allocation5 [shape = 's32[1]{0}', space=sflag, size = 0x4, scoped, tag = 'scoped memory for tpu_custom_call.1']
  #allocation6 [shape = 'u8[512]{0}', space=smem, size = 0x200, scoped, tag = 'prefetched SMEM operand 0']
  #allocation7 [shape = 's32[]', space=sflag, size = 0x4, offset = 0, fixed_abs, tag = 'sflag constant byte address 0x0 - dummy sync flag']
  #allocation8 [shape = 's32[]', space=sflag, size = 0x4, offset = 0, fixed_abs, tag = 'sflag constant byte address 0x0 - dummy sync flag']
  #allocation9 [shape = 'u32[]', space=smem, size = 0x4, offset = 0x44, fixed_abs, tag = 'smem constant byte address 0x44 - assertion arg 0']
  #allocation10 [shape = 'u32[]', space=smem, size = 0x4, offset = 0x48, fixed_abs, tag = 'smem constant byte address 0x48 - assertion arg 1']
  #allocation11 [shape = 's32[]', space=sflag, size = 0x4, offset = 0, fixed_abs, tag = 'sflag constant byte address 0x0 - dummy sync flag']
  #allocation12 [shape = 's32[]', space=sflag, size = 0x4, offset = 0, fixed_abs, tag = 'sflag constant byte address 0x0 - dummy sync flag']
  #allocation13 [shape = 's32[]', space=sflag, size = 0x4, offset = 0, fixed_abs, tag = 'sflag constant byte address 0x0 - dummy sync flag']
  #allocation14 [shape = 's32[]', space=sflag, size = 0x4, offset = 0, fixed_abs, tag = 'sflag constant byte address 0x0 - dummy sync flag']
  #allocation15 [shape = 's32[]', space=sflag, size = 0x4, offset = 0, fixed_abs, tag = 'sflag constant byte address 0x0 - dummy sync flag']
  #allocation16 [shape = 's32[]', space=sflag, size = 0x4, offset = 0, fixed_abs, tag = 'sflag constant byte address 0x0 - dummy sync flag']
  #allocation17 [shape = 's32[]', space=sflag, size = 0x4, offset = 0, fixed_abs, tag = 'sflag constant byte address 0x0 - dummy sync flag']
  #allocation18 [shape = 's32[]', space=sflag, size = 0x4, offset = 0, fixed_abs, tag = 'sflag constant byte address 0x0 - dummy sync flag']
  #allocation19 [shape = 's32[]', space=sflag, size = 0x4, offset = 0, fixed_abs, tag = 'sflag constant byte address 0x0 - dummy sync flag']
  #allocation20 [shape = 's32[]', space=sflag, size = 0x4, offset = 0, fixed_abs, tag = 'sflag constant byte address 0x0 - dummy sync flag']
  #allocation21 [shape = 's32[]', space=sflag, size = 0x4, offset = 0, fixed_abs, tag = 'sflag constant byte address 0x0 - dummy sync flag']
  #allocation22 [shape = 's32[]', space=sflag, size = 0x4, offset = 0, fixed_abs, tag = 'sflag constant byte address 0x0 - dummy sync flag']
  #allocation23 [shape = 's32[]', space=sflag, size = 0x4, offset = 0, fixed_abs, tag = 'sflag constant byte address 0x0 - dummy sync flag']
  #allocation24 [shape = 's32[]', space=sflag, size = 0x4, offset = 0, fixed_abs, tag = 'sflag constant byte address 0x0 - dummy sync flag']
  #allocation25 [shape = 's32[]', space=sflag, size = 0x4, offset = 0, fixed_abs, tag = 'sflag constant byte address 0x0 - dummy sync flag']
  #allocation26 [shape = 's32[]', space=sflag, size = 0x4, offset = 0, fixed_abs, tag = 'sflag constant byte address 0x0 - dummy sync flag']
  %s0 = inlined_call_operand.hbm [shape: s32[16], index: 0, kind: input, shape index: {}]
  %s1 = inlined_call_operand.hbm [shape: f32[65,128], index: 1, kind: input, shape index: {}]
  %s2 = inlined_call_operand.hbm [shape: f32[16,128], index: 2, kind: output, shape index: {}]
  %s3 = sld [smem:[#allocation0]]
  $region82: #{tpu_custom_call.1} parent=0
    _
  %s5 = ssub.s32 1, %s3
  %s6 = scalar_select 0, %s5, %s3
  %s8 = sshll.u32 %s0, 4
  %s9 = int_to_ptr.hbm [resolvable:$true] %s8
  %11 = dma.hbm_to_smem %s9, 16, [#allocation6], [#allocation5]
  %13 = dma.done [#allocation5], 16
  %14 = sfence
  loop: start=0, step=1, limit=2
  $region2: #{tpu_custom_call.1} parent=0 // loop_pre_header
    _
  $region3: #{tpu_custom_call.1} parent=0 // loop_header
    %s16 = sphi 0, %s20
    %p17 = scmp.ge.s32.totalorder %s16, 2
  $region4: #{tpu_custom_call.1} parent=0 // loop_header_branch
    %19 = sbr.rel (%p17) target = $region8
  $region5: #{tpu_custom_call.1} parent=0 // loop_body
    %s21 = sadd.s32 %s16, 1
    %p22 = scmp.lt.s32.totalorder %s16, 0
    %s23 = ssub.s32 0, %s16
    %s24 = scalar_select %p22, %s23, %s16
    %s25 = sand.u32 %s24, 1
    %s26 = ssub.s32 0, %s25
    %s27 = scalar_select %p22, %s26, %s25
    %p28 = scmp.ne.s32.totalorder %s27, 0
    %p29 = scmp.lt.s32.totalorder %s27, 0
    %p30 = pnand %p29, %p28
    %p31 = pneg %p30
    %s32 = sadd.s32 %s27, 2
    %s33 = scalar_select %p31, %s32, %s27
    %s34 = ssub.s32 1, %s33
    %p35 = scmp.eq.s32.totalorder %s16, 0
    // Predicated region
    $region9: #{tpu_custom_call.1} parent=5 // pred_check
      %p36 = pneg %p35
    $region10: #{tpu_custom_call.1} parent=5 // pred_check_branch
      %38 = sbr.rel (%p36) target = $region12
    $region11: #{tpu_custom_call.1} parent=5 // pred_region
      loop: start=0, step=1, limit=2
      $region13: #{tpu_custom_call.1} parent=11 // loop_pre_header
        _
      $region14: #{tpu_custom_call.1} parent=11 // loop_header
        %s40 = sphi 0, %s44
        %p41 = scmp.ge.s32.totalorder %s40, 2
      $region15: #{tpu_custom_call.1} parent=11 // loop_header_branch
        %43 = sbr.rel (%p41) target = $region19
      $region16: #{tpu_custom_call.1} parent=11 // loop_body
        %s45 = smul.u32 %s40, 4
        %s46 = sld [smem:[#allocation6 + %s45]]
        %p47 = scmp.lt.s32.totalorder %s46, 0
        %p48 = scmp.ge.s32.totalorder %s46, 64
        %p49 = por %p47, %p48
        %s50 = scalar_select %p49, 64, %s46
        %s51 = scalar_lea.hbm %s1, %s50
        %s52 = scalar_lea.vmem [#allocation2], %s45
        // Predicated region
        $region20: #{tpu_custom_call.1} parent=16 // pred_check
          _
        $region21: #{tpu_custom_call.1} parent=16 // pred_check_branch
          %54 = sbr.rel target = $region23
        $region22: #{tpu_custom_call.1} parent=16 // pred_region
          %55 = sst [smem:[#allocation9]] [#allocation8]
          %56 = sst [smem:[#allocation10]] [#allocation7]
        $region23: #{tpu_custom_call.1} parent=16 // pred_fallthru
          _
        %58 = shalt.err (0)
        %s60 = sshll.u32 %s51, 4
        %s61 = int_to_ptr.hbm [resolvable:$true] %s60
        %s62 = sshll.u32 %s52, 4
        %s63 = int_to_ptr.vmem [resolvable:$true] %s62
        %65 = dma.hbm_to_vmem [thread:$0]  %s61, 16, %s63, [#allocation3]
        %s66 = sadd.s32 %s45, 1
        %s67 = sld [smem:[#allocation6 + %s66]]
        %p68 = scmp.lt.s32.totalorder %s67, 0
        %p69 = scmp.ge.s32.totalorder %s67, 64
        %p70 = por %p68, %p69
        %s71 = scalar_select %p70, 64, %s67
        %s72 = scalar_lea.hbm %s1, %s71
        %s73 = scalar_lea.vmem [#allocation2], %s66
        // Predicated region
        $region24: #{tpu_custom_call.1} parent=16 // pred_check
          _
        $region25: #{tpu_custom_call.1} parent=16 // pred_check_branch
          %75 = sbr.rel target = $region27
        $region26: #{tpu_custom_call.1} parent=16 // pred_region
          %76 = sst [smem:[#allocation9]] [#allocation12]
          %77 = sst [smem:[#allocation10]] [#allocation11]
        $region27: #{tpu_custom_call.1} parent=16 // pred_fallthru
          _
        %79 = shalt.err (0)
        %s81 = sshll.u32 %s72, 4
        %s82 = int_to_ptr.hbm [resolvable:$true] %s81
        %s83 = sshll.u32 %s73, 4
        %s84 = int_to_ptr.vmem [resolvable:$true] %s83
        %86 = dma.hbm_to_vmem [thread:$0]  %s82, 16, %s84, [#allocation3]
        %s87 = sadd.s32 %s45, 2
        %s88 = sld [smem:[#allocation6 + %s87]]
        %p89 = scmp.lt.s32.totalorder %s88, 0
        %p90 = scmp.ge.s32.totalorder %s88, 64
        %p91 = por %p89, %p90
        %s92 = scalar_select %p91, 64, %s88
        %s93 = scalar_lea.hbm %s1, %s92
        %s94 = scalar_lea.vmem [#allocation2], %s87
        // Predicated region
        $region28: #{tpu_custom_call.1} parent=16 // pred_check
          _
        $region29: #{tpu_custom_call.1} parent=16 // pred_check_branch
          %96 = sbr.rel target = $region31
        $region30: #{tpu_custom_call.1} parent=16 // pred_region
          %97 = sst [smem:[#allocation9]] [#allocation14]
          %98 = sst [smem:[#allocation10]] [#allocation13]
        $region31: #{tpu_custom_call.1} parent=16 // pred_fallthru
          _
        %100 = shalt.err (0)
        %s102 = sshll.u32 %s93, 4
        %s103 = int_to_ptr.hbm [resolvable:$true] %s102
        %s104 = sshll.u32 %s94, 4
        %s105 = int_to_ptr.vmem [resolvable:$true] %s104
        %107 = dma.hbm_to_vmem [thread:$0]  %s103, 16, %s105, [#allocation3]
        %s108 = sadd.s32 %s45, 3
        %s109 = sld [smem:[#allocation6 + %s108]]
        %p110 = scmp.lt.s32.totalorder %s109, 0
        %p111 = scmp.ge.s32.totalorder %s109, 64
        %p112 = por %p110, %p111
        %s113 = scalar_select %p112, 64, %s109
        %s114 = scalar_lea.hbm %s1, %s113
        %s115 = scalar_lea.vmem [#allocation2], %s108
        // Predicated region
        $region32: #{tpu_custom_call.1} parent=16 // pred_check
          _
        $region33: #{tpu_custom_call.1} parent=16 // pred_check_branch
          %117 = sbr.rel target = $region35
        $region34: #{tpu_custom_call.1} parent=16 // pred_region
          %118 = sst [smem:[#allocation9]] [#allocation16]
          %119 = sst [smem:[#allocation10]] [#allocation15]
        $region35: #{tpu_custom_call.1} parent=16 // pred_fallthru
          _
        %121 = shalt.err (0)
        %s123 = sshll.u32 %s114, 4
        %s124 = int_to_ptr.hbm [resolvable:$true] %s123
        %s125 = sshll.u32 %s115, 4
        %s126 = int_to_ptr.vmem [resolvable:$true] %s125
        %128 = dma.hbm_to_vmem [thread:$0]  %s124, 16, %s126, [#allocation3]
      $region17: #{tpu_custom_call.1} parent=11 // loop_footer
        %s44 = sadd.s32 1, %s40
      $region18: #{tpu_custom_call.1} parent=11 // loop_footer_branch
        %39 = sbr.rel target = $region14
      $region19: #{tpu_custom_call.1} parent=11 // loop_exit
        _
    $region12: #{tpu_custom_call.1} parent=5 // pred_fallthru
      _
    %p129 = scmp.ge.s32.totalorder %s16, 1
    // Predicated region
    $region36: #{tpu_custom_call.1} parent=5 // pred_check
      %p130 = pneg %p129
    $region37: #{tpu_custom_call.1} parent=5 // pred_check_branch
      %132 = sbr.rel (%p130) target = $region39
    $region38: #{tpu_custom_call.1} parent=5 // pred_region
      %s133 = ssub.s32 %s16, 1
      %s134 = smul.u32 %s133, 8
      %s135 = scalar_lea.sflag [#allocation4], %s34
      %s136 = smul.u32 8, 1
      %s137 = sshll.u32 %s136, 4
      %138 = dma.done %s135, %s137
    $region39: #{tpu_custom_call.1} parent=5 // pred_fallthru
      _
    %s139 = sadd.s32 %s16, 1
    %p140 = scmp.lt.s32.totalorder %s139, 2
    // Predicated region
    $region40: #{tpu_custom_call.1} parent=5 // pred_check
      %p141 = pneg %p140
    $region41: #{tpu_custom_call.1} parent=5 // pred_check_branch
      %143 = sbr.rel (%p141) target = $region43
    $region42: #{tpu_custom_call.1} parent=5 // pred_region
      %s144 = smul.u32 %s139, 8
      loop: start=0, step=1, limit=2
      $region44: #{tpu_custom_call.1} parent=42 // loop_pre_header
        _
      $region45: #{tpu_custom_call.1} parent=42 // loop_header
        %s146 = sphi 0, %s150
        %p147 = scmp.ge.s32.totalorder %s146, 2
      $region46: #{tpu_custom_call.1} parent=42 // loop_header_branch
        %149 = sbr.rel (%p147) target = $region50
      $region47: #{tpu_custom_call.1} parent=42 // loop_body
        %s151 = smul.u32 %s146, 4
        %s152 = sadd.s32 %s144, %s151
        %s153 = sld [smem:[#allocation6 + %s152]]
        %p154 = scmp.lt.s32.totalorder %s153, 0
        %p155 = scmp.ge.s32.totalorder %s153, 64
        %p156 = por %p154, %p155
        %s157 = scalar_select %p156, 64, %s153
        %s158 = scalar_lea.hbm %s1, %s157
        %s159 = smul.u32 %s34, 8
        %s160 = sadd.s32 %s151, %s159
        %s161 = scalar_lea.vmem [#allocation2], %s160
        %s162 = scalar_lea.sflag [#allocation3], %s34
        // Predicated region
        $region51: #{tpu_custom_call.1} parent=47 // pred_check
          _
        $region52: #{tpu_custom_call.1} parent=47 // pred_check_branch
          %164 = sbr.rel target = $region54
        $region53: #{tpu_custom_call.1} parent=47 // pred_region
          %165 = sst [smem:[#allocation9]] [#allocation18]
          %166 = sst [smem:[#allocation10]] [#allocation17]
        $region54: #{tpu_custom_call.1} parent=47 // pred_fallthru
          _
        %168 = shalt.err (0)
        %s170 = sshll.u32 %s158, 4
        %s171 = int_to_ptr.hbm [resolvable:$true] %s170
        %s172 = sshll.u32 %s161, 4
        %s173 = int_to_ptr.vmem [resolvable:$true] %s172
        %175 = dma.hbm_to_vmem [thread:$0]  %s171, 16, %s173, %s162
        %s176 = sadd.s32 %s151, 1
        %s177 = sadd.s32 %s144, %s176
        %s178 = sld [smem:[#allocation6 + %s177]]
        %p179 = scmp.lt.s32.totalorder %s178, 0
        %p180 = scmp.ge.s32.totalorder %s178, 64
        %p181 = por %p179, %p180
        %s182 = scalar_select %p181, 64, %s178
        %s183 = scalar_lea.hbm %s1, %s182
        %s184 = sadd.s32 %s176, %s159
        %s185 = scalar_lea.vmem [#allocation2], %s184
        // Predicated region
        $region55: #{tpu_custom_call.1} parent=47 // pred_check
          _
        $region56: #{tpu_custom_call.1} parent=47 // pred_check_branch
          %187 = sbr.rel target = $region58
        $region57: #{tpu_custom_call.1} parent=47 // pred_region
          %188 = sst [smem:[#allocation9]] [#allocation20]
          %189 = sst [smem:[#allocation10]] [#allocation19]
        $region58: #{tpu_custom_call.1} parent=47 // pred_fallthru
          _
        %191 = shalt.err (0)
        %s193 = sshll.u32 %s183, 4
        %s194 = int_to_ptr.hbm [resolvable:$true] %s193
        %s195 = sshll.u32 %s185, 4
        %s196 = int_to_ptr.vmem [resolvable:$true] %s195
        %198 = dma.hbm_to_vmem [thread:$0]  %s194, 16, %s196, %s162
        %s199 = sadd.s32 %s151, 2
        %s200 = sadd.s32 %s144, %s199
        %s201 = sld [smem:[#allocation6 + %s200]]
        %p202 = scmp.lt.s32.totalorder %s201, 0
        %p203 = scmp.ge.s32.totalorder %s201, 64
        %p204 = por %p202, %p203
        %s205 = scalar_select %p204, 64, %s201
        %s206 = scalar_lea.hbm %s1, %s205
        %s207 = sadd.s32 %s199, %s159
        %s208 = scalar_lea.vmem [#allocation2], %s207
        // Predicated region
        $region59: #{tpu_custom_call.1} parent=47 // pred_check
          _
        $region60: #{tpu_custom_call.1} parent=47 // pred_check_branch
          %210 = sbr.rel target = $region62
        $region61: #{tpu_custom_call.1} parent=47 // pred_region
          %211 = sst [smem:[#allocation9]] [#allocation22]
          %212 = sst [smem:[#allocation10]] [#allocation21]
        $region62: #{tpu_custom_call.1} parent=47 // pred_fallthru
          _
        %214 = shalt.err (0)
        %s216 = sshll.u32 %s206, 4
        %s217 = int_to_ptr.hbm [resolvable:$true] %s216
        %s218 = sshll.u32 %s208, 4
        %s219 = int_to_ptr.vmem [resolvable:$true] %s218
        %221 = dma.hbm_to_vmem [thread:$0]  %s217, 16, %s219, %s162
        %s222 = sadd.s32 %s151, 3
        %s223 = sadd.s32 %s144, %s222
        %s224 = sld [smem:[#allocation6 + %s223]]
        %p225 = scmp.lt.s32.totalorder %s224, 0
        %p226 = scmp.ge.s32.totalorder %s224, 64
        %p227 = por %p225, %p226
        %s228 = scalar_select %p227, 64, %s224
        %s229 = scalar_lea.hbm %s1, %s228
        %s230 = sadd.s32 %s222, %s159
        %s231 = scalar_lea.vmem [#allocation2], %s230
        // Predicated region
        $region63: #{tpu_custom_call.1} parent=47 // pred_check
          _
        $region64: #{tpu_custom_call.1} parent=47 // pred_check_branch
          %233 = sbr.rel target = $region66
        $region65: #{tpu_custom_call.1} parent=47 // pred_region
          %234 = sst [smem:[#allocation9]] [#allocation24]
          %235 = sst [smem:[#allocation10]] [#allocation23]
        $region66: #{tpu_custom_call.1} parent=47 // pred_fallthru
          _
        %237 = shalt.err (0)
        %s239 = sshll.u32 %s229, 4
        %s240 = int_to_ptr.hbm [resolvable:$true] %s239
        %s241 = sshll.u32 %s231, 4
        %s242 = int_to_ptr.vmem [resolvable:$true] %s241
        %244 = dma.hbm_to_vmem [thread:$0]  %s240, 16, %s242, %s162
      $region48: #{tpu_custom_call.1} parent=42 // loop_footer
        %s150 = sadd.s32 1, %s146
      $region49: #{tpu_custom_call.1} parent=42 // loop_footer_branch
        %145 = sbr.rel target = $region45
      $region50: #{tpu_custom_call.1} parent=42 // loop_exit
        _
    $region43: #{tpu_custom_call.1} parent=5 // pred_fallthru
      _
    loop: start=0, step=1, limit=2
    $region67: #{tpu_custom_call.1} parent=5 // loop_pre_header
      _
    $region68: #{tpu_custom_call.1} parent=5 // loop_header
      %s246 = sphi 0, %s250
      %p247 = scmp.ge.s32.totalorder %s246, 2
    $region69: #{tpu_custom_call.1} parent=5 // loop_header_branch
      %249 = sbr.rel (%p247) target = $region73
    $region70: #{tpu_custom_call.1} parent=5 // loop_body
      %s251 = scalar_lea.sflag [#allocation3], %s33
      %s252 = smul.u32 1, 1
      %s253 = sshll.u32 %s252, 4
      %254 = dma.done %s251, %s253
      %s255 = sshll.u32 %s252, 4
      %256 = dma.done %s251, %s255
      %s257 = sshll.u32 %s252, 4
      %258 = dma.done %s251, %s257
      %s259 = sshll.u32 %s252, 4
      %260 = dma.done %s251, %s259
    $region71: #{tpu_custom_call.1} parent=5 // loop_footer
      %s250 = sadd.s32 1, %s246
    $region72: #{tpu_custom_call.1} parent=5 // loop_footer_branch
      %245 = sbr.rel target = $region68
    $region73: #{tpu_custom_call.1} parent=5 // loop_exit
      _
    %s261 = smul.u32 %s16, 8
    %s262 = smul.u32 %s33, 8
    %s263 = scalar_lea.vmem [#allocation2], %s262
    %s264 = scalar_lea.hbm %s2, %s261
    %s265 = scalar_lea.sflag [#allocation4], %s33
    // Predicated region
    $region74: #{tpu_custom_call.1} parent=5 // pred_check
      _
    $region75: #{tpu_custom_call.1} parent=5 // pred_check_branch
      %267 = sbr.rel target = $region77
    $region76: #{tpu_custom_call.1} parent=5 // pred_region
      %268 = sst [smem:[#allocation9]] [#allocation26]
      %269 = sst [smem:[#allocation10]] [#allocation25]
    $region77: #{tpu_custom_call.1} parent=5 // pred_fallthru
      _
    %271 = shalt.err (0)
    %s273 = sshll.u32 %s263, 4
    %s274 = int_to_ptr.vmem [resolvable:$true] %s273
    %s275 = sshll.u32 %s264, 4
    %s276 = int_to_ptr.hbm [resolvable:$true] %s275
    %278 = dma.vmem_to_hbm [thread:$0]  %s274, 128, %s276, %s265
    %p279 = scmp.eq.s32.totalorder %s16, 1
    // Predicated region
    $region78: #{tpu_custom_call.1} parent=5 // pred_check
      %p280 = pneg %p279
    $region79: #{tpu_custom_call.1} parent=5 // pred_check_branch
      %282 = sbr.rel (%p280) target = $region81
    $region80: #{tpu_custom_call.1} parent=5 // pred_region
      %s283 = smul.u32 8, 1
      %s284 = sshll.u32 %s283, 4
      %285 = dma.done %s265, %s284
    $region81: #{tpu_custom_call.1} parent=5 // pred_fallthru
      _
  $region6: #{tpu_custom_call.1} parent=0 // loop_footer
    %s20 = sadd.s32 1, %s16
  $region7: #{tpu_custom_call.1} parent=0 // loop_footer_branch
    %15 = sbr.rel target = $region3
  $region8: #{tpu_custom_call.1} parent=0 // loop_exit
    _
  %286 = vsyncmov [#allocation3]
  %s287 = vpop.sfrf %286
  %p288 = scmp.eq.s32.totalorder %s287, 0
  %p289 = pneg %p288
  %291 = shalt.err (%p289)
  %s292 = scalar_lea.sflag [#allocation3], 1
  %293 = vsyncmov %s292
  %s294 = vpop.sfrf %293
  %p295 = scmp.eq.s32.totalorder %s294, 0
  %p296 = pneg %p295
  %298 = shalt.err (%p296)
  %299 = vsyncmov [#allocation4]
  %s300 = vpop.sfrf %299
  %p301 = scmp.eq.s32.totalorder %s300, 0
  %p302 = pneg %p301
  %304 = shalt.err (%p302)
  %s305 = scalar_lea.sflag [#allocation4], 1
  %306 = vsyncmov %s305
  %s307 = vpop.sfrf %306
  %p308 = scmp.eq.s32.totalorder %s307, 0
  %p309 = pneg %p308
  %311 = shalt.err (%p309)

</llo_original>
